<compile_context>
chip_gen: v7x
topology: tpu7x:2x2x1
jax: 0.10.0
libtpu: 0.0.40
codegen_flags: <defaults>
</compile_context>

<pallas_src>
import functools

import jax
import jax.numpy as jnp
from jax import lax
from jax.experimental import pallas as pl
from jax.experimental.pallas import tpu as pltpu


_TARGET_STEP_BYTES = 2 * 1024 * 1024   # aim for >= 1-2 MiB of input per grid step
_MAX_STEP_BYTES = 4 * 1024 * 1024      # cap so 2x input buffers + f32 accumulators
                                       # stay well under the requested VMEM limit
_VMEM_LIMIT_BYTES = 32 * 1024 * 1024   # <= physical VMEM on v5e/v6e/v7x


def _choose_tiles(R, HW, S, itemsize):
    """Pick (rows_per_block, lanes_per_block) for the (R=B*C, HW=H*W) layout."""
    rb = R if (R % 8) else 8
    if HW % 128 != 0:
        # Block dim == full array dim is always layout-legal (small/odd maps).
        thw = HW
    else:
        cap = max(128, _TARGET_STEP_BYTES // (S * rb * itemsize))
        if HW <= cap:
            thw = HW
        else:
            thw = 128
            t = (cap // 128) * 128
            while t >= 128:          # largest multiple-of-128 divisor of HW <= cap
                if HW % t == 0:
                    thw = t
                    break
                t -= 128
    if R % 8 == 0:
        # Grow the row block (keeping 8-divisibility and exact division of R) until
        # the per-step block is big enough; stop before blowing the VMEM budget.
        while (rb < R and R % (rb * 2) == 0
               and S * (rb * 2) * thw * itemsize <= _MAX_STEP_BYTES):
            rb *= 2
    return rb, thw


def _choose_out_lanes(thw):
    """Lane width of the per-row partial written to HBM (lane-dense when possible)."""
    if thw % 128 != 0:
        return thw
    for w in (512, 256, 128):
        if thw % w == 0:
            return w
    return 128


def _disc_adv_kernel(signs_ref, *refs, num_scales, hinge):
    """Grid = (row_blocks [parallel], hw_tiles [arbitrary reduction]).

    signs_ref   : (S, rb, 1)  f32   per-row +/-1 sign for each scale
    x_refs[s]   : (rb, thw)         prediction block for scale s (rows = (b, c))
    out_ref     : (1, S*rb, L) f32  per-row lane-group partial sums (written once)
    acc_refs[s] : (rb, thw)   f32   VMEM accumulator carried across hw tiles
    """
    x_refs = refs[:num_scales]
    out_ref = refs[num_scales]
    acc_refs = refs[num_scales + 1:]

    t = pl.program_id(1)

    @pl.when(t == 0)
    def _init():
        for s in range(num_scales):
            acc_refs[s][...] = jnp.zeros_like(acc_refs[s])

    for s in range(num_scales):
        x = x_refs[s][...].astype(jnp.float32)          # (rb, thw)
        v = signs_ref[s] * x                            # (rb, 1) lane-broadcast
        if hinge:
            v = jnp.maximum(1.0 + v, 0.0)
        acc_refs[s][...] += v

    @pl.when(t == pl.num_programs(1) - 1)
    def _finalize():
        rb, thw = acc_refs[0].shape
        out_lanes = out_ref.shape[-1]
        n_fold = thw // out_lanes
        for s in range(num_scales):
            folded = acc_refs[s][:, 0:out_lanes]
            for j in range(1, n_fold):                  # cheap once-per-row-block fold
                folded = folded + acc_refs[s][:, j * out_lanes:(j + 1) * out_lanes]
            out_ref[0, s * rb:(s + 1) * rb, :] = folded


def _adv_partial_sums(preds, scale_indices, *, hinge=True):
    """Fused hinge/wasserstein partial sums for S same-shaped prediction maps.

    preds:         list of S arrays, each (B, C, H, W), identical shape & dtype.
    scale_indices: list of S channel indices (the `i` of HingeLoss(pred, i)).
    Returns an (S,) f32 array: sum over all elements of relu(1 + sign_s * pred_s)
    (hinge) or sign_s * pred_s (wasserstein), with sign_s = +1 on channel
    scale_indices[s] and -1 elsewhere (d_train=True).
    """
    S = len(preds)
    B, C, H, W = preds[0].shape
    R, HW = B * C, H * W
    itemsize = jnp.dtype(preds[0].dtype).itemsize

    rb, thw = _choose_tiles(R, HW, S, itemsize)
    out_lanes = _choose_out_lanes(thw)
    n_rb, T = R // rb, HW // thw

    # Tiny per-row sign table, one row per (batch, channel) pair.
    ch = jnp.tile(jnp.arange(C, dtype=jnp.int32), B)                     # (R,)
    idx = jnp.asarray(list(scale_indices), dtype=jnp.int32)              # (S,)
    signs = jnp.where(ch[None, :] == idx[:, None], 1.0, -1.0)
    signs = signs.astype(jnp.float32)[:, :, None]                        # (S, R, 1)

    xs = [p.reshape(R, HW) for p in preds]      # pure reshapes: no transpose, no copy

    kernel = functools.partial(_disc_adv_kernel, num_scales=S, hinge=bool(hinge))

    n_total = S * R * HW
    cost = pl.CostEstimate(
        flops=4 * n_total,                       # sign mul + add 1 + max + acc add
        transcendentals=0,
        bytes_accessed=(n_total * itemsize       # predictions (dtype-aware)
                        + S * R * 4              # sign table
                        + n_rb * S * rb * out_lanes * 4))   # partial output

    partials = pl.pallas_call(
        kernel,
        out_shape=jax.ShapeDtypeStruct((n_rb, S * rb, out_lanes), jnp.float32),
        grid_spec=pltpu.PrefetchScalarGridSpec(
            num_scalar_prefetch=0,
            grid=(n_rb, T),
            in_specs=([pl.BlockSpec((S, rb, 1), lambda r, t: (0, r, 0))]
                      + [pl.BlockSpec((rb, thw), lambda r, t: (r, t))
                         for _ in range(S)]),
            out_specs=pl.BlockSpec((1, S * rb, out_lanes), lambda r, t: (r, 0, 0)),
            scratch_shapes=[pltpu.VMEM((rb, thw), jnp.float32) for _ in range(S)]),
        compiler_params=pltpu.CompilerParams(
            dimension_semantics=("parallel", "arbitrary"),
            vmem_limit_bytes=_VMEM_LIMIT_BYTES),
        cost_estimate=cost,
    )(signs, *xs)

    # Tiny final reduction in XLA: (n_rb, S, rb, out_lanes) -> per-scale sums.
    return partials.reshape(n_rb, S, rb, out_lanes).sum(axis=(0, 2, 3))


def discriminator_loss(adv_predictions, masks=None, *,
                       adv_loss_weight=0.1, valid_scale=(0, 1, 2),
                       use_hinge=True):
    """Matches DiscriminatorLoss.forward with ADV_LOSS_FN='hinge' (d_train=True).

    Set use_hinge=False for the plain (non-masking) WassersteinLoss config.
    """
    # TODO(synk): WassersteinLossWithMasking / normalize-with-mask branch and the
    # optional `scaling` arg are not implemented; only the default configs here.
    del masks
    preds = [adv_predictions[i] for i in valid_scale]
    scales = list(valid_scale)

    same = all(p.shape == preds[0].shape and p.dtype == preds[0].dtype
               for p in preds)
    if same:
        sums = _adv_partial_sums(preds, scales, hinge=use_hinge)         # (S,)
        adv_losses = sums / jnp.float32(preds[0].size)
    else:
        # Per-scale fallback when the discriminator emits different map sizes.
        adv_losses = jnp.stack([
            _adv_partial_sums([p], [i], hinge=use_hinge)[0] / jnp.float32(p.size)
            for p, i in zip(preds, scales)])

    loss = adv_loss_weight * jnp.sum(adv_losses) / len(scales)
    loss_dict = {'dis_adv_loss:{}'.format(i): lax.stop_gradient(adv_losses[k])
                 for k, i in enumerate(scales)}
    loss_dict['total_adv_loss'] = lax.stop_gradient(loss)
    return loss, loss_dict


def _reference(adv_predictions, adv_loss_weight, valid_scale, hinge=True):
    loss = 0.0
    d = {}
    for i in valid_scale:
        pred = adv_predictions[i].astype(jnp.float32)
        C = pred.shape[1]
        sign = jnp.where(jnp.arange(C) == i, 1.0, -1.0)[None, :, None, None]
        val = sign * pred
        if hinge:
            val = jnp.maximum(1.0 + val, 0.0)
        adv_loss = jnp.mean(val)
        loss = loss + adv_loss_weight * adv_loss
        d['dis_adv_loss:{}'.format(i)] = adv_loss
    loss = loss / len(valid_scale)
    d['total_adv_loss'] = loss
    return loss, d


if __name__ == "__main__":
    adv_loss_weight = 0.1
    valid_scale = (0, 1, 2)

    def check(adv_predictions, use_hinge=True):
        loss, loss_dict = discriminator_loss(
            adv_predictions, adv_loss_weight=adv_loss_weight,
            valid_scale=valid_scale, use_hinge=use_hinge)
        jax.block_until_ready((loss, loss_dict))
        ref_loss, ref_dict = _reference(adv_predictions, adv_loss_weight,
                                        valid_scale, hinge=use_hinge)
        assert jnp.allclose(loss, ref_loss, rtol=1e-4, atol=1e-6), (loss, ref_loss)
        for k in ref_dict:
            assert jnp.allclose(loss_dict[k], ref_dict[k], rtol=1e-4, atol=1e-6), (
                k, loss_dict[k], ref_dict[k])

    # 1) Small, same-shaped scales -> single fused pallas_call.
    #    pred per scale: (B, num_output_class, h, w); num_output_class == 3.
    B, C, H, W = 2, 3, 16, 16
    keys = jax.random.split(jax.random.PRNGKey(0), 3)
    preds_same = [jax.random.normal(k, (B, C, H, W), jnp.float32) for k in keys]
    check(preds_same)

    # 2) Different map size per scale -> per-scale fallback path.
    sizes = (16, 8, 4)
    keys = jax.random.split(jax.random.PRNGKey(1), 3)
    preds_diff = [jax.random.normal(k, (B, C, s, s), jnp.float32)
                  for k, s in zip(keys, sizes)]
    check(preds_diff)

    # 3) Larger case exercising the parallel row-block axis (R=24 -> rb=8, 3 blocks)
    #    and the hw-tile accumulator (HW=25600 -> 2 hw tiles).
    keys = jax.random.split(jax.random.PRNGKey(2), 3)
    preds_big = [jax.random.normal(k, (8, 3, 160, 160), jnp.float32) for k in keys]
    check(preds_big)

    print("KERNEL_OK")
</pallas_src>

<mosaic_0001>
module attributes {stable_mosaic.version = 11 : i64} {
  func.func @_disc_adv_kernel(%arg0: i32, %arg1: i32, %arg2: memref<3x6x1xf32, #tpu.memory_space<vmem>>, %arg3: memref<6x256xf32, #tpu.memory_space<vmem>>, %arg4: memref<6x256xf32, #tpu.memory_space<vmem>>, %arg5: memref<6x256xf32, #tpu.memory_space<vmem>>, %arg6: memref<1x18x256xf32, #tpu.memory_space<vmem>>, %arg7: memref<6x256xf32, #tpu.memory_space<vmem>>, %arg8: memref<6x256xf32, #tpu.memory_space<vmem>>, %arg9: memref<6x256xf32, #tpu.memory_space<vmem>>) attributes {dimension_semantics = [#tpu.dimension_semantics<parallel>, #tpu.dimension_semantics<arbitrary>], iteration_bounds = array<i64: 1, 1>, scalar_prefetch = 0 : i64, scratch_operands = 3 : i64, tpu.core_type = #tpu.core_type<tc>, window_params = [{transform_indices = @transform_0, window_bounds = array<i64: 3, 6, 1>}, {transform_indices = @transform_1, window_bounds = array<i64: 6, 256>}, {transform_indices = @transform_2, window_bounds = array<i64: 6, 256>}, {transform_indices = @transform_3, window_bounds = array<i64: 6, 256>}, {transform_indices = @transform_4, window_bounds = array<i64: 1, 18, 256>}]} {
    %c0_i32 = arith.constant 0 : i32
    %0 = arith.cmpi eq, %arg1, %c0_i32 : i32
    %1 = arith.extui %0 : i1 to i32
    %c0_i32_0 = arith.constant 0 : i32
    %2 = arith.cmpi ne, %1, %c0_i32_0 : i32
    scf.if %2 {
      %cst_32 = arith.constant 0.000000e+00 : f32
      %42 = vector.broadcast %cst_32 : f32 to vector<6x256xf32>
      %c0_33 = arith.constant 0 : index
      %c0_34 = arith.constant 0 : index
      %43 = vector.load %arg7[%c0_33, %c0_34] : memref<6x256xf32, #tpu.memory_space<vmem>>, vector<6x256xf32>
      tpu.vector_store %arg7[%c0_33, %c0_34], %42 {strides = array<i32>} : memref<6x256xf32, #tpu.memory_space<vmem>>, vector<6x256xf32>,
      %cst_35 = arith.constant 0.000000e+00 : f32
      %44 = vector.broadcast %cst_35 : f32 to vector<6x256xf32>
      %c0_36 = arith.constant 0 : index
      %c0_37 = arith.constant 0 : index
      %45 = vector.load %arg8[%c0_36, %c0_37] : memref<6x256xf32, #tpu.memory_space<vmem>>, vector<6x256xf32>
      tpu.vector_store %arg8[%c0_36, %c0_37], %44 {strides = array<i32>} : memref<6x256xf32, #tpu.memory_space<vmem>>, vector<6x256xf32>,
      %cst_38 = arith.constant 0.000000e+00 : f32
      %46 = vector.broadcast %cst_38 : f32 to vector<6x256xf32>
      %c0_39 = arith.constant 0 : index
      %c0_40 = arith.constant 0 : index
      %47 = vector.load %arg9[%c0_39, %c0_40] : memref<6x256xf32, #tpu.memory_space<vmem>>, vector<6x256xf32>
      tpu.vector_store %arg9[%c0_39, %c0_40], %46 {strides = array<i32>} : memref<6x256xf32, #tpu.memory_space<vmem>>, vector<6x256xf32>,
    } else {
    }
    %c0 = arith.constant 0 : index
    %c0_1 = arith.constant 0 : index
    %3 = vector.load %arg3[%c0, %c0_1] : memref<6x256xf32, #tpu.memory_space<vmem>>, vector<6x256xf32>
    %c0_2 = arith.constant 0 : index
    %c0_3 = arith.constant 0 : index
    %c0_4 = arith.constant 0 : index
    %4 = vector.load %arg2[%c0_2, %c0_3, %c0_4] : memref<3x6x1xf32, #tpu.memory_space<vmem>>, vector<1x6x1xf32>
    %5 = vector.shape_cast %4 : vector<1x6x1xf32> to vector<6x1xf32>
    %6 = vector.broadcast %5 : vector<6x1xf32> to vector<6x256xf32>
    %7 = arith.mulf %6, %3 : vector<6x256xf32>
    %cst = arith.constant 1.000000e+00 : f32
    %8 = vector.broadcast %cst : f32 to vector<6x256xf32>
    %9 = arith.addf %8, %7 : vector<6x256xf32>
    %cst_5 = arith.constant 0.000000e+00 : f32
    %10 = vector.broadcast %cst_5 : f32 to vector<6x256xf32>
    %11 = arith.maximumf %9, %10 : vector<6x256xf32>
    %c0_6 = arith.constant 0 : index
    %c0_7 = arith.constant 0 : index
    %12 = vector.load %arg7[%c0_6, %c0_7] : memref<6x256xf32, #tpu.memory_space<vmem>>, vector<6x256xf32>
    %13 = arith.addf %12, %11 : vector<6x256xf32>
    %c0_8 = arith.constant 0 : index
    %c0_9 = arith.constant 0 : index
    %14 = vector.load %arg7[%c0_8, %c0_9] : memref<6x256xf32, #tpu.memory_space<vmem>>, vector<6x256xf32>
    tpu.vector_store %arg7[%c0_8, %c0_9], %13 {strides = array<i32>} : memref<6x256xf32, #tpu.memory_space<vmem>>, vector<6x256xf32>,
    %c0_10 = arith.constant 0 : index
    %c0_11 = arith.constant 0 : index
    %15 = vector.load %arg4[%c0_10, %c0_11] : memref<6x256xf32, #tpu.memory_space<vmem>>, vector<6x256xf32>
    %c1 = arith.constant 1 : index
    %c0_12 = arith.constant 0 : index
    %c0_13 = arith.constant 0 : index
    %16 = vector.load %arg2[%c1, %c0_12, %c0_13] : memref<3x6x1xf32, #tpu.memory_space<vmem>>, vector<1x6x1xf32>
    %17 = vector.shape_cast %16 : vector<1x6x1xf32> to vector<6x1xf32>
    %18 = vector.broadcast %17 : vector<6x1xf32> to vector<6x256xf32>
    %19 = arith.mulf %18, %15 : vector<6x256xf32>
    %cst_14 = arith.constant 1.000000e+00 : f32
    %20 = vector.broadcast %cst_14 : f32 to vector<6x256xf32>
    %21 = arith.addf %20, %19 : vector<6x256xf32>
    %cst_15 = arith.constant 0.000000e+00 : f32
    %22 = vector.broadcast %cst_15 : f32 to vector<6x256xf32>
    %23 = arith.maximumf %21, %22 : vector<6x256xf32>
    %c0_16 = arith.constant 0 : index
    %c0_17 = arith.constant 0 : index
    %24 = vector.load %arg8[%c0_16, %c0_17] : memref<6x256xf32, #tpu.memory_space<vmem>>, vector<6x256xf32>
    %25 = arith.addf %24, %23 : vector<6x256xf32>
    %c0_18 = arith.constant 0 : index
    %c0_19 = arith.constant 0 : index
    %26 = vector.load %arg8[%c0_18, %c0_19] : memref<6x256xf32, #tpu.memory_space<vmem>>, vector<6x256xf32>
    tpu.vector_store %arg8[%c0_18, %c0_19], %25 {strides = array<i32>} : memref<6x256xf32, #tpu.memory_space<vmem>>, vector<6x256xf32>,
    %c0_20 = arith.constant 0 : index
    %c0_21 = arith.constant 0 : index
    %27 = vector.load %arg5[%c0_20, %c0_21] : memref<6x256xf32, #tpu.memory_space<vmem>>, vector<6x256xf32>
    %c2 = arith.constant 2 : index
    %c0_22 = arith.constant 0 : index
    %c0_23 = arith.constant 0 : index
    %28 = vector.load %arg2[%c2, %c0_22, %c0_23] : memref<3x6x1xf32, #tpu.memory_space<vmem>>, vector<1x6x1xf32>
    %29 = vector.shape_cast %28 : vector<1x6x1xf32> to vector<6x1xf32>
    %30 = vector.broadcast %29 : vector<6x1xf32> to vector<6x256xf32>
    %31 = arith.mulf %30, %27 : vector<6x256xf32>
    %cst_24 = arith.constant 1.000000e+00 : f32
    %32 = vector.broadcast %cst_24 : f32 to vector<6x256xf32>
    %33 = arith.addf %32, %31 : vector<6x256xf32>
    %cst_25 = arith.constant 0.000000e+00 : f32
    %34 = vector.broadcast %cst_25 : f32 to vector<6x256xf32>
    %35 = arith.maximumf %33, %34 : vector<6x256xf32>
    %c0_26 = arith.constant 0 : index
    %c0_27 = arith.constant 0 : index
    %36 = vector.load %arg9[%c0_26, %c0_27] : memref<6x256xf32, #tpu.memory_space<vmem>>, vector<6x256xf32>
    %37 = arith.addf %36, %35 : vector<6x256xf32>
    %c0_28 = arith.constant 0 : index
    %c0_29 = arith.constant 0 : index
    %38 = vector.load %arg9[%c0_28, %c0_29] : memref<6x256xf32, #tpu.memory_space<vmem>>, vector<6x256xf32>
    tpu.vector_store %arg9[%c0_28, %c0_29], %37 {strides = array<i32>} : memref<6x256xf32, #tpu.memory_space<vmem>>, vector<6x256xf32>,
    %c0_i32_30 = arith.constant 0 : i32
    %39 = arith.cmpi eq, %arg1, %c0_i32_30 : i32
    %40 = arith.extui %39 : i1 to i32
    %c0_i32_31 = arith.constant 0 : i32
    %41 = arith.cmpi ne, %40, %c0_i32_31 : i32
    scf.if %41 {
      %c0_32 = arith.constant 0 : index
      %c0_33 = arith.constant 0 : index
      %42 = vector.load %arg7[%c0_32, %c0_33] : memref<6x256xf32, #tpu.memory_space<vmem>>, vector<6x256xf32>
      %c0_34 = arith.constant 0 : index
      %c0_35 = arith.constant 0 : index
      %c0_36 = arith.constant 0 : index
      %43 = vector.load %arg6[%c0_34, %c0_35, %c0_36] : memref<1x18x256xf32, #tpu.memory_space<vmem>>, vector<1x6x256xf32>
      %44 = vector.shape_cast %43 : vector<1x6x256xf32> to vector<6x256xf32>
      %45 = vector.shape_cast %42 : vector<6x256xf32> to vector<1x6x256xf32>
      tpu.vector_store %arg6[%c0_34, %c0_35, %c0_36], %45 {strides = array<i32>} : memref<1x18x256xf32, #tpu.memory_space<vmem>>, vector<1x6x256xf32>,
      %c0_37 = arith.constant 0 : index
      %c0_38 = arith.constant 0 : index
      %46 = vector.load %arg8[%c0_37, %c0_38] : memref<6x256xf32, #tpu.memory_space<vmem>>, vector<6x256xf32>
      %c0_39 = arith.constant 0 : index
      %c6 = arith.constant 6 : index
      %c0_40 = arith.constant 0 : index
      %47 = vector.load %arg6[%c0_39, %c6, %c0_40] : memref<1x18x256xf32, #tpu.memory_space<vmem>>, vector<1x6x256xf32>
      %48 = vector.shape_cast %47 : vector<1x6x256xf32> to vector<6x256xf32>
      %49 = vector.shape_cast %46 : vector<6x256xf32> to vector<1x6x256xf32>
      tpu.vector_store %arg6[%c0_39, %c6, %c0_40], %49 {strides = array<i32>} : memref<1x18x256xf32, #tpu.memory_space<vmem>>, vector<1x6x256xf32>,
      %c0_41 = arith.constant 0 : index
      %c0_42 = arith.constant 0 : index
      %50 = vector.load %arg9[%c0_41, %c0_42] : memref<6x256xf32, #tpu.memory_space<vmem>>, vector<6x256xf32>
      %c0_43 = arith.constant 0 : index
      %c12 = arith.constant 12 : index
      %c0_44 = arith.constant 0 : index
      %51 = vector.load %arg6[%c0_43, %c12, %c0_44] : memref<1x18x256xf32, #tpu.memory_space<vmem>>, vector<1x6x256xf32>
      %52 = vector.shape_cast %51 : vector<1x6x256xf32> to vector<6x256xf32>
      %53 = vector.shape_cast %50 : vector<6x256xf32> to vector<1x6x256xf32>
      tpu.vector_store %arg6[%c0_43, %c12, %c0_44], %53 {strides = array<i32>} : memref<1x18x256xf32, #tpu.memory_space<vmem>>, vector<1x6x256xf32>,
    } else {
    }
    return
  }
  func.func @transform_0(%arg0: i32, %arg1: i32) -> (i32, i32, i32) {
    %c0_i32 = arith.constant 0 : i32
    %c0_i32_0 = arith.constant 0 : i32
    %c0_i32_1 = arith.constant 0 : i32
    return %c0_i32, %arg0, %c0_i32_0 : i32, i32, i32
  }
  func.func @transform_1(%arg0: i32, %arg1: i32) -> (i32, i32) {
    %c0_i32 = arith.constant 0 : i32
    return %arg0, %arg1 : i32, i32
  }
  func.func @transform_2(%arg0: i32, %arg1: i32) -> (i32, i32) {
    %c0_i32 = arith.constant 0 : i32
    return %arg0, %arg1 : i32, i32
  }
  func.func @transform_3(%arg0: i32, %arg1: i32) -> (i32, i32) {
    %c0_i32 = arith.constant 0 : i32
    return %arg0, %arg1 : i32, i32
  }
  func.func @transform_4(%arg0: i32, %arg1: i32) -> (i32, i32, i32) {
    %c0_i32 = arith.constant 0 : i32
    %c0_i32_0 = arith.constant 0 : i32
    %c0_i32_1 = arith.constant 0 : i32
    return %arg0, %c0_i32, %c0_i32_0 : i32, i32, i32
  }
}

</mosaic_0001>

<llo_original>
// kernel: tpu_custom_call.1
$region0: #{tpu_custom_call.1}
  #allocation0 [shape = 'u32[]', space=smem, size = 0x4, offset = 0x4, fixed_abs, tag = 'smem constant byte address 0x4 - core index']
  #allocation1 [shape = 'u32[144,128]{1,0:T(1,128)}', space=vmem, size = 0x12000, scoped, tag = 'internal scratch']
  #allocation2 [shape = 'f32[6,256]{1,0:T(8,128)}', space=vmem, size = 0x2000, scoped, tag = 'scratch operand']
  #allocation3 [shape = 'f32[6,256]{1,0:T(8,128)}', space=vmem, size = 0x2000, scoped, tag = 'scratch operand']
  #allocation4 [shape = 'f32[6,256]{1,0:T(8,128)}', space=vmem, size = 0x2000, scoped, tag = 'scratch operand']
  %s0 = inlined_call_operand.vmem [shape: f32[3,6,1], index: 0, kind: input, shape index: {}]
  %s1 = inlined_call_operand.vmem [shape: f32[6,256], index: 1, kind: input, shape index: {}]
  %s2 = inlined_call_operand.vmem [shape: f32[6,256], index: 2, kind: input, shape index: {}]
  %s3 = inlined_call_operand.hbm [shape: f32[6,256], index: 3, kind: input, shape index: {}]
  %s4 = inlined_call_operand.vmem [shape: f32[1,18,256], index: 4, kind: output, shape index: {}]
  %s5 = sld [smem:[#allocation0]]
  $region38: #{tpu_custom_call.1} parent=0
    _
  %s7 = ssub.s32 1, %s5
  %s8 = scalar_select 0, %s7, %s5
  $region1: #{tpu_custom_call.1} parent=0
    #allocation5 [shape = 'u8[8192]{0}', space=vmem, size = 0x2000, scoped, tag = 'input window, operand 3, single buffered']
    #allocation6 [shape = 's32[1]{0}', space=sflag, size = 0x4, scoped, tag = 'scoped memory for tpu_custom_call.1']
    %9 = vsyncpa [#allocation6], 0
    // Predicated region
    $region2: #{tpu_custom_call.1} parent=1 // pred_check
      _
    $region3: #{tpu_custom_call.1} parent=1 // pred_check_branch
      %11 = sbr.rel (0) target = $region5
    $region4: #{tpu_custom_call.1} parent=1 // pred_region
      _
    $region5: #{tpu_custom_call.1} parent=1 // pred_fallthru
      _
    // Predicated region
    $region6: #{tpu_custom_call.1} parent=1 // pred_check
      _
    $region7: #{tpu_custom_call.1} parent=1 // pred_check_branch
      %13 = sbr.rel (0) target = $region9
    $region8: #{tpu_custom_call.1} parent=1 // pred_region
      _
    $region9: #{tpu_custom_call.1} parent=1 // pred_fallthru
      _
    // Predicated region
    $region10: #{tpu_custom_call.1} parent=1 // pred_check
      _
    $region11: #{tpu_custom_call.1} parent=1 // pred_check_branch
      %15 = sbr.rel (0) target = $region13
    $region12: #{tpu_custom_call.1} parent=1 // pred_region
      _
    $region13: #{tpu_custom_call.1} parent=1 // pred_fallthru
      _
    // Predicated region
    $region14: #{tpu_custom_call.1} parent=1 // pred_check
      _
    $region15: #{tpu_custom_call.1} parent=1 // pred_check_branch
      %17 = sbr.rel (0) target = $region17
    $region16: #{tpu_custom_call.1} parent=1 // pred_region
      %s19 = ssub.s32 256, 256
      %20 = vsyncadd [#allocation6], %s19
      %s22 = sshll.u32 [#allocation5], 4
      %s23 = int_to_ptr.vmem [resolvable:$true] %s22
      %25 = dma.hbm_to_vmem [thread:$0]  %s3, 256, %s23, [#allocation6]
    $region17: #{tpu_custom_call.1} parent=1 // pred_fallthru
      _
    // Predicated region
    $region18: #{tpu_custom_call.1} parent=1 // pred_check
      _
    $region19: #{tpu_custom_call.1} parent=1 // pred_check_branch
      %27 = sbr.rel (0) target = $region21
    $region20: #{tpu_custom_call.1} parent=1 // pred_region
      %28 = dma.done [#allocation6], 256
    $region21: #{tpu_custom_call.1} parent=1 // pred_fallthru
      _
    %p29 = scmp.eq.s32.totalorder 0, 0
    // Predicated region
    $region22: #{tpu_custom_call.1} parent=1 // pred_check
      %p30 = pneg %p29
    $region23: #{tpu_custom_call.1} parent=1 // pred_check_branch
      %32 = sbr.rel (%p30) target = $region25
    $region24: #{tpu_custom_call.1} parent=1 // pred_region
      %33 = vst [vmem:[#allocation2] sm:$0x3f] 0.0
      %34 = vst [vmem:[#allocation2 + $0x8] sm:$0x3f] 0.0
      %35 = vst [vmem:[#allocation3] sm:$0x3f] 0.0
      %36 = vst [vmem:[#allocation3 + $0x8] sm:$0x3f] 0.0
      %37 = vst [vmem:[#allocation4] sm:$0x3f] 0.0
      %38 = vst [vmem:[#allocation4 + $0x8] sm:$0x3f] 0.0
    $region25: #{tpu_custom_call.1} parent=1 // pred_fallthru
      _
    %v39 = vld [vmem:[%s1] sm:$0x3f]
    %v40 = vld [vmem:[%s1 + $0x8] sm:$0x3f]
    %v41 = vld [vmem:[%s0] sm:$0x3f]
    %43 = vset.pattern.permute.xlu0 0
    %44 = vperm.xlu0 %43, %v41
    %v45 = vpop.permute.xlu0 %44
    %v47 = vmul.f32 %v45, %v39
    %v48 = vmul.f32 %v45, %v40
    %v49 = vadd.f32 %v47, 1.0
    %v50 = vadd.f32 %v48, 1.0
    %v51 = vmax.f32 %v49, 0.0
    %v52 = vmax.f32 %v50, 0.0
    %v53 = vld [vmem:[#allocation2] sm:$0x3f]
    %v54 = vld [vmem:[#allocation2 + $0x8] sm:$0x3f]
    %v55 = vadd.f32 %v53, %v51
    %v56 = vadd.f32 %v54, %v52
    %57 = vst [vmem:[#allocation2] sm:$0x3f] %v55
    %58 = vst [vmem:[#allocation2 + $0x8] sm:$0x3f] %v56
    %v59 = vld [vmem:[%s2] sm:$0x3f]
    %v60 = vld [vmem:[%s2 + $0x8] sm:$0x3f]
    %s61 = scalar_lea.vmem %s0, 8
    %v62 = vld [vmem:[%s61] sm:$0x3f]
    %64 = vset.pattern.permute.xlu0 0
    %65 = vperm.xlu0 %64, %v62
    %v66 = vpop.permute.xlu0 %65
    %v68 = vmul.f32 %v66, %v59
    %v69 = vmul.f32 %v66, %v60
    %v70 = vadd.f32 %v68, 1.0
    %v71 = vadd.f32 %v69, 1.0
    %v72 = vmax.f32 %v70, 0.0
    %v73 = vmax.f32 %v71, 0.0
    %v74 = vld [vmem:[#allocation3] sm:$0x3f]
    %v75 = vld [vmem:[#allocation3 + $0x8] sm:$0x3f]
    %v76 = vadd.f32 %v74, %v72
    %v77 = vadd.f32 %v75, %v73
    %78 = vst [vmem:[#allocation3] sm:$0x3f] %v76
    %79 = vst [vmem:[#allocation3 + $0x8] sm:$0x3f] %v77
    %v80 = vld [vmem:[#allocation5] sm:$0x3f]
    %v81 = vld [vmem:[#allocation5 + $0x8] sm:$0x3f]
    %s82 = scalar_lea.vmem %s0, 16
    %v83 = vld [vmem:[%s82] sm:$0x3f]
    %85 = vset.pattern.permute.xlu0 0
    %86 = vperm.xlu0 %85, %v83
    %v87 = vpop.permute.xlu0 %86
    %v89 = vmul.f32 %v87, %v80
    %v90 = vmul.f32 %v87, %v81
    %v91 = vadd.f32 %v89, 1.0
    %v92 = vadd.f32 %v90, 1.0
    %v93 = vmax.f32 %v91, 0.0
    %v94 = vmax.f32 %v92, 0.0
    %v95 = vld [vmem:[#allocation4] sm:$0x3f]
    %v96 = vld [vmem:[#allocation4 + $0x8] sm:$0x3f]
    %v97 = vadd.f32 %v95, %v93
    %v98 = vadd.f32 %v96, %v94
    %99 = vst [vmem:[#allocation4] sm:$0x3f] %v97
    %100 = vst [vmem:[#allocation4 + $0x8] sm:$0x3f] %v98
    // Predicated region
    $region26: #{tpu_custom_call.1} parent=1 // pred_check
      %p101 = pneg %p29
    $region27: #{tpu_custom_call.1} parent=1 // pred_check_branch
      %103 = sbr.rel (%p101) target = $region29
    $region28: #{tpu_custom_call.1} parent=1 // pred_region
      %v104 = vld [vmem:[#allocation2] sm:$0x3f]
      %v105 = vld [vmem:[#allocation2 + $0x8] sm:$0x3f]
      %106 = vst [vmem:[%s4] sm:$0x3f] %v104
      %107 = vst [vmem:[%s4 + $0x8] sm:$0x3f] %v105
      %v108 = vld [vmem:[#allocation3] sm:$0x3f]
      %v109 = vld [vmem:[#allocation3 + $0x8] sm:$0x3f]
      %v112 = vrot.slane %v108, 2
      %v113 = vrot.slane %v109, 2
      %116 = vst [vmem:[%s4] sm:$0xc0] %v112
      %117 = vst [vmem:[%s4 + $0x8] sm:$0xc0] %v113
      %118 = vst [vmem:[%s4 + $0x10] sm:$0xf] %v112
      %119 = vst [vmem:[%s4 + $0x18] sm:$0xf] %v113
      %v120 = vld [vmem:[#allocation4] sm:$0x3f]
      %v121 = vld [vmem:[#allocation4 + $0x8] sm:$0x3f]
      %v124 = vrot.slane %v120, 4
      %v125 = vrot.slane %v121, 4
      %128 = vst [vmem:[%s4 + $0x10] sm:$0xf0] %v124
      %129 = vst [vmem:[%s4 + $0x18] sm:$0xf0] %v125
      %130 = vst [vmem:[%s4 + $0x20] sm:$0x3] %v124
      %131 = vst [vmem:[%s4 + $0x28] sm:$0x3] %v125
    $region29: #{tpu_custom_call.1} parent=1 // pred_fallthru
      _
    // Predicated region
    $region30: #{tpu_custom_call.1} parent=1 // pred_check
      _
    $region31: #{tpu_custom_call.1} parent=1 // pred_check_branch
      %133 = sbr.rel (0) target = $region33
    $region32: #{tpu_custom_call.1} parent=1 // pred_region
      _
    $region33: #{tpu_custom_call.1} parent=1 // pred_fallthru
      _
    // Predicated region
    $region34: #{tpu_custom_call.1} parent=1 // pred_check
      _
    $region35: #{tpu_custom_call.1} parent=1 // pred_check_branch
      %135 = sbr.rel (0) target = $region37
    $region36: #{tpu_custom_call.1} parent=1 // pred_region
      _
    $region37: #{tpu_custom_call.1} parent=1 // pred_fallthru
      _
    %136 = vsyncpa [#allocation6], 1

</llo_original>
